<compile_context>
chip_gen: v6e
topology: v6e:2x2x1
jax: 0.10.0
libtpu: 0.0.40
codegen_flags: <defaults>
</compile_context>

<pallas_src>
import functools

import jax
import jax.numpy as jnp
from jax.experimental import pallas as pl
from jax.experimental.pallas import tpu as pltpu

_MAX_VMEM_WORKING_SET = 40 * 1024 * 1024   # cap on the pipelined working set
_VMEM_FRACTION = 0.6                       # fraction of physical VMEM we will use
_FALLBACK_VMEM_BYTES = 64 * 1024 * 1024    # v7x per-TC physical (smallest gen)


def _vmem_capacity_bytes():
    """Generation-aware VMEM size; conservative fallback if the query fails."""
    try:
        return int(pltpu.get_tpu_info().vmem_capacity_bytes)
    except Exception:
        return _FALLBACK_VMEM_BYTES


def _recall_ce_kernel(x_ref, t_ref, o_ref, *, hw, tile_hw, ragged):
    """Writes this block's partial sum of per-pixel cross-entropy."""
    x = x_ref[...].astype(jnp.float32)          # (1, C, T): classes on sublanes
    t = t_ref[...]                              # (1, 1, T) int32 targets

    # Numerically-stable log-sum-exp over the class (sublane) axis.
    m = jnp.max(x, axis=1, keepdims=True)                              # (1,1,T)
    lse = m + jnp.log(jnp.sum(jnp.exp(x - m), axis=1, keepdims=True))  # (1,1,T)

    # Logit at the target class via a one-hot select (VPU-friendly gather).
    _, c, tt = x.shape
    class_ids = jax.lax.broadcasted_iota(jnp.int32, (1, c, tt), 1)
    hit = jnp.where(class_ids == t, x, 0.0)

    if ragged:
        # Mask pixels past the true extent (garbage lanes from the partial DMA
        # of the last block); select (not multiply) keeps it NaN/Inf-safe.
        j = pl.program_id(1)
        offs = j * tile_hw + jax.lax.broadcasted_iota(jnp.int32, (1, 1, tt), 2)
        valid = offs < hw
        lse_sum = jnp.sum(jnp.where(valid, lse, 0.0))
        xt_sum = jnp.sum(jnp.where(valid, jnp.sum(hit, axis=1, keepdims=True), 0.0))
        block_sum = lse_sum - xt_sum
    else:
        # No per-pixel CE intermediates: sum(lse) - sum(x[target]).
        block_sum = jnp.sum(lse) - jnp.sum(hit)

    # Lane-dense, fully (8,128)-aligned partial-sum tile (unmasked vst).
    o_ref[...] = jnp.full(o_ref.shape, block_sum, dtype=o_ref.dtype)


def recall_cross_entropy(logits_nchw, target_nhw, *, tile_hw=None):
    """Equivalent of RecallCrossEntropy().forward(input, target)."""
    n, c, h, w = logits_nchw.shape
    hw = h * w

    # --- generation-aware tile selection -------------------------------------
    itemsize = jnp.dtype(logits_nchw.dtype).itemsize
    pack = max(1, 4 // itemsize) * 8                 # sublane pack: f32->8, bf16->16
    c_store = ((c + pack - 1) // pack) * pack        # padded classes as stored
    c_f32 = ((c + 7) // 8) * 8                       # padded classes for f32 temps

    # VMEM bytes per pixel column across the pipeline: double-buffered logits
    # block + ~3 full-size f32 temporaries (upcast, exp, one-hot select) +
    # double-buffered int32 targets (8-sublane padded).
    per_pixel = 2 * c_store * itemsize + 3 * c_f32 * 4 + 2 * 8 * 4

    vmem_total = _vmem_capacity_bytes()
    budget = min(int(vmem_total * _VMEM_FRACTION), _MAX_VMEM_WORKING_SET)
    if per_pixel * 128 > budget:
        # TODO(synk): add a class-chunked online-LSE path (extra 'arbitrary'
        # grid axis over C) for vocabulary-sized class counts.
        raise ValueError(
            f"n_classes={c} too large for a single-pass block within "
            f"{budget} bytes of VMEM")
    max_tile = max(128, ((budget // per_pixel) // 128) * 128)

    if tile_hw is None:
        tile_hw = max_tile
    tile_hw = min(tile_hw, max_tile)
    if tile_hw >= hw:
        tile_hw = hw                                   # full row: always legal
    else:
        tile_hw = max(128, (tile_hw // 128) * 128)     # lane-aligned tile
    grid_hw = pl.cdiv(hw, tile_hw)

    # v7x megacore: ensure >=2 total grid steps so both TensorCores get work.
    if n == 1 and grid_hw == 1 and hw > 128:
        tile_hw = max(128, ((((hw + 1) // 2) + 127) // 128) * 128)
        grid_hw = pl.cdiv(hw, tile_hw)
    ragged = (hw % tile_hw) != 0

    # Explicit scoped-VMEM limit (defaults: 16 MiB v5e / 32 MiB v6e,v7x), sized
    # to the actual working set + margin, never past physical capacity.
    vmem_limit = int(min(vmem_total, max(per_pixel * tile_hw + (8 << 20),
                                         16 << 20)))

    # --- layout (free reshapes: only merge trailing contiguous dims) ---------
    x3 = logits_nchw.reshape(n, c, hw)                 # classes on sublane axis
    t3 = target_nhw.reshape(n, 1, hw).astype(jnp.int32)

    kernel = functools.partial(
        _recall_ce_kernel, hw=hw, tile_hw=tile_hw, ragged=ragged)

    partials = pl.pallas_call(
        kernel,
        out_shape=jax.ShapeDtypeStruct((n, grid_hw, 8, 128), jnp.float32),
        grid=(n, grid_hw),
        in_specs=[
            pl.BlockSpec((1, c, tile_hw), lambda i, j: (i, 0, j)),
            pl.BlockSpec((1, 1, tile_hw), lambda i, j: (i, 0, j)),
        ],
        out_specs=pl.BlockSpec((1, 1, 8, 128), lambda i, j: (i, j, 0, 0)),
        compiler_params=pltpu.CompilerParams(
            dimension_semantics=("parallel", "parallel"),
            vmem_limit_bytes=vmem_limit),
    )(x3, t3)

    # reduction='mean' over every pixel (no ignore_index is active in the ref).
    total = jnp.sum(partials[:, :, 0, 0])
    return total / (n * hw)


def _reference(logits_nchw, target_nhw):
    """Pure-JAX reference matching the PyTorch forward."""
    logp = jax.nn.log_softmax(logits_nchw.astype(jnp.float32), axis=1)
    logp = jnp.transpose(logp, (0, 2, 3, 1))                     # NHWC
    ce = -jnp.take_along_axis(logp, target_nhw[..., None], axis=-1)[..., 0]
    return jnp.mean(ce)


if __name__ == "__main__":
    n_classes = 66
    key = jax.random.PRNGKey(0)
    k1, k2, k3, k4, k5, k6 = jax.random.split(key, 6)

    # Case 1: batch=2, n_classes=66, spatial 16x16 (auto tile, one block/image).
    logits = jax.random.normal(k1, (2, n_classes, 16, 16), dtype=jnp.float32)
    target = jax.random.randint(k2, (2, 16, 16), 0, n_classes, dtype=jnp.int32)
    loss = jax.block_until_ready(recall_cross_entropy(logits, target))
    ref = jax.block_until_ready(_reference(logits, target))
    assert jnp.allclose(loss, ref, rtol=1e-5, atol=1e-5), (loss, ref)

    # Case 2: ragged spatial extent (17x13) with small forced tiles to exercise
    # the multi-block grid and the in-kernel last-tile mask.
    logits2 = jax.random.normal(k3, (2, n_classes, 17, 13), dtype=jnp.float32)
    target2 = jax.random.randint(k4, (2, 17, 13), 0, n_classes, dtype=jnp.int32)
    loss2 = jax.block_until_ready(
        recall_cross_entropy(logits2, target2, tile_hw=128))
    ref2 = jax.block_until_ready(_reference(logits2, target2))
    assert jnp.allclose(loss2, ref2, rtol=1e-5, atol=1e-5), (loss2, ref2)

    # Case 3: batch=1 bf16 logits -> exercises the bf16 sublane-padding budget
    # and the >=2-grid-step megacore split.
    logits3 = jax.random.normal(
        k5, (1, n_classes, 32, 16), dtype=jnp.float32).astype(jnp.bfloat16)
    target3 = jax.random.randint(k6, (1, 32, 16), 0, n_classes, dtype=jnp.int32)
    loss3 = jax.block_until_ready(recall_cross_entropy(logits3, target3))
    ref3 = jax.block_until_ready(_reference(logits3, target3))
    assert jnp.allclose(loss3, ref3, rtol=1e-4, atol=1e-4), (loss3, ref3)

    print("KERNEL_OK")
</pallas_src>

<mosaic_0001>
module attributes {stable_mosaic.version = 11 : i64} {
  func.func @_recall_ce_kernel(%arg0: i32, %arg1: i32, %arg2: memref<1x66x256xf32, #tpu.memory_space<vmem>>, %arg3: memref<1x1x256xi32, #tpu.memory_space<vmem>>, %arg4: memref<1x1x8x128xf32, #tpu.memory_space<vmem>>) attributes {dimension_semantics = [#tpu.dimension_semantics<parallel>, #tpu.dimension_semantics<parallel>], iteration_bounds = array<i64: 2, 1>, scalar_prefetch = 0 : i64, scratch_operands = 0 : i64, tpu.core_type = #tpu.core_type<tc>, window_params = [{transform_indices = @transform_0, window_bounds = array<i64: 1, 66, 256>}, {transform_indices = @transform_1, window_bounds = array<i64: 1, 1, 256>}, {transform_indices = @transform_2, window_bounds = array<i64: 1, 1, 8, 128>}]} {
    %c0 = arith.constant 0 : index
    %c0_0 = arith.constant 0 : index
    %c0_1 = arith.constant 0 : index
    %0 = vector.load %arg2[%c0, %c0_0, %c0_1] : memref<1x66x256xf32, #tpu.memory_space<vmem>>, vector<1x66x256xf32>
    %c0_2 = arith.constant 0 : index
    %c0_3 = arith.constant 0 : index
    %c0_4 = arith.constant 0 : index
    %1 = vector.load %arg3[%c0_2, %c0_3, %c0_4] : memref<1x1x256xi32, #tpu.memory_space<vmem>>, vector<1x1x256xi32>
    %cst = arith.constant dense<0xFF800000> : vector<1x256xf32>
    %2 = vector.multi_reduction <maximumf>, %0, %cst [1] : vector<1x66x256xf32> to vector<1x256xf32>
    %3 = vector.shape_cast %2 : vector<1x256xf32> to vector<1x1x256xf32>
    %4 = vector.broadcast %3 : vector<1x1x256xf32> to vector<1x66x256xf32>
    %5 = arith.subf %0, %4 : vector<1x66x256xf32>
    %6 = math.exp %5 : vector<1x66x256xf32>
    %cst_5 = arith.constant dense<0.000000e+00> : vector<1x256xf32>
    %7 = vector.multi_reduction <add>, %6, %cst_5 [1] : vector<1x66x256xf32> to vector<1x256xf32>
    %8 = vector.shape_cast %7 : vector<1x256xf32> to vector<1x1x256xf32>
    %9 = math.log %8 : vector<1x1x256xf32>
    %10 = arith.addf %3, %9 : vector<1x1x256xf32>
    %11 = tpu.iota {dimensions = array<i32: 1>} : vector<1x66x256xi32>
    %12 = vector.broadcast %1 : vector<1x1x256xi32> to vector<1x66x256xi32>
    %13 = arith.cmpi eq, %11, %12 : vector<1x66x256xi32>
    %cst_6 = arith.constant 0.000000e+00 : f32
    %14 = vector.broadcast %cst_6 : f32 to vector<1x66x256xf32>
    %15 = arith.select %13, %0, %14 : vector<1x66x256xi1>, vector<1x66x256xf32>
    %16 = vector.shape_cast %10 : vector<1x1x256xf32> to vector<1x1x1x256xf32>
    %cst_7 = arith.constant dense<0.000000e+00> : vector<1xf32>
    %17 = vector.multi_reduction <add>, %16, %cst_7 [1, 2, 3] : vector<1x1x1x256xf32> to vector<1xf32>
    %18 = vector.shape_cast %17 : vector<1xf32> to vector<1x1x1x1xf32>
    %19 = vector.extract %18[0, 0, 0, 0] : f32 from vector<1x1x1x1xf32>
    %20 = vector.shape_cast %15 : vector<1x66x256xf32> to vector<1x1x66x256xf32>
    %cst_8 = arith.constant dense<0.000000e+00> : vector<1xf32>
    %21 = vector.multi_reduction <add>, %20, %cst_8 [1, 2, 3] : vector<1x1x66x256xf32> to vector<1xf32>
    %22 = vector.shape_cast %21 : vector<1xf32> to vector<1x1x1x1xf32>
    %23 = vector.extract %22[0, 0, 0, 0] : f32 from vector<1x1x1x1xf32>
    %24 = arith.subf %19, %23 : f32
    %25 = vector.broadcast %24 : f32 to vector<1x1x8x128xf32>
    %c0_9 = arith.constant 0 : index
    %c0_10 = arith.constant 0 : index
    %c0_11 = arith.constant 0 : index
    %c0_12 = arith.constant 0 : index
    %26 = vector.load %arg4[%c0_9, %c0_10, %c0_11, %c0_12] : memref<1x1x8x128xf32, #tpu.memory_space<vmem>>, vector<1x1x8x128xf32>
    tpu.vector_store %arg4[%c0_9, %c0_10, %c0_11, %c0_12], %25 {strides = array<i32>} : memref<1x1x8x128xf32, #tpu.memory_space<vmem>>, vector<1x1x8x128xf32>,
    return
  }
  func.func @transform_0(%arg0: i32, %arg1: i32) -> (i32, i32, i32) {
    %c0_i32 = arith.constant 0 : i32
    %c0_i32_0 = arith.constant 0 : i32
    return %arg0, %c0_i32, %arg1 : i32, i32, i32
  }
  func.func @transform_1(%arg0: i32, %arg1: i32) -> (i32, i32, i32) {
    %c0_i32 = arith.constant 0 : i32
    %c0_i32_0 = arith.constant 0 : i32
    return %arg0, %c0_i32, %arg1 : i32, i32, i32
  }
  func.func @transform_2(%arg0: i32, %arg1: i32) -> (i32, i32, i32, i32) {
    %c0_i32 = arith.constant 0 : i32
    %c0_i32_0 = arith.constant 0 : i32
    %c0_i32_1 = arith.constant 0 : i32
    return %arg0, %arg1, %c0_i32, %c0_i32_0 : i32, i32, i32, i32
  }
}

</mosaic_0001>

<llo_original>
// kernel: tpu_custom_call.1
$region0: #{tpu_custom_call.1}
  #allocation0 [shape = 'u32[]', space=smem, size = 0x4, offset = 0x4, fixed_abs, tag = 'smem constant byte address 0x4 - core index']
  #allocation1 [shape = 'u32[144,128]{1,0:T(1,128)}', space=vmem, size = 0x12000, scoped, tag = 'internal scratch']
  %s0 = inlined_call_operand.vmem [shape: f32[2,66,256], index: 0, kind: input, shape index: {}]
  %s1 = inlined_call_operand.vmem [shape: s32[2,1,256], index: 1, kind: input, shape index: {}]
  %s2 = inlined_call_operand.hbm [shape: f32[2,1,8,128], index: 2, kind: output, shape index: {}]
  %s3 = sld [smem:[#allocation0]]
  $region41: #{tpu_custom_call.1} parent=0
    _
  %s5 = ssub.s32 1, %s3
  %s6 = scalar_select 0, %s5, %s3
  $region1: #{tpu_custom_call.1} parent=0
    #allocation2 [shape = 'u8[8192]{0}', space=vmem, size = 0x2000, scoped, tag = 'output window, operand 0']
    #allocation3 [shape = 's32[2]{0}', space=sflag, size = 0x8, scoped, tag = 'scoped memory for tpu_custom_call.1']
    %7 = vsyncpa [#allocation3], 0
    %s8 = scalar_lea.sflag [#allocation3], 1
    %9 = vsyncpa %s8, 0
    loop: start=0, step=1, limit=4
    $region2: #{tpu_custom_call.1} parent=1 // loop_pre_header
      _
    $region3: #{tpu_custom_call.1} parent=1 // loop_header
      %s11 = sphi 0, %s15
      %p12 = scmp.ge.s32.totalorder %s11, 4
      %s18 = sphi 0, %s30
      %s19 = sphi 0, %s26
      %s20 = sphi 0, %s18
      %s21 = sphi 0, %s19
      %s22 = sphi 0, %s20
      %s23 = sphi 0, %s21
      %s35 = sphi 0, %s37
      %s38 = sphi 0, %s35
      %s39 = sphi 0, %s38
      %s55 = sphi 0, %s39
      %s63 = sphi 0, %s65
      %s66 = sphi 0, %s63
      %s67 = sphi 0, %s66
      %s83 = sphi 0, %s67
      %s91 = sphi 0, %s93
      %s94 = sphi 0, %s91
      %s95 = sphi 0, %s94
      %s111 = sphi 0, %s95
    $region4: #{tpu_custom_call.1} parent=1 // loop_header_branch
      %14 = sbr.rel (%p12) target = $region8
    $region5: #{tpu_custom_call.1} parent=1 // loop_body
      %s16 = ssub.s32 %s11, 1
      %s17 = ssub.s32 %s11, 2
      %s24 = sadd.s32 1, %s19
      %p25 = scmp.ge.s32.totalorder %s24, 1
      %s26 = scalar_select %p25, 0, %s24
      %s27 = sadd.s32 1, %s18
      %s28 = scalar_select %p25, %s27, %s18
      %p29 = scmp.ge.s32.totalorder %s28, 2
      %s30 = scalar_select %p29, 0, %s28
      %s31 = ssub.s32 %s18, %s30
      %s32 = ssub.s32 %s19, %s26
      %s33 = sor.u32 %s31, %s32
      %p34 = scmp.eq.s32.totalorder %s33, 0
      %s36 = sadd.s32 %s35, 1
      %s37 = scalar_select %p34, %s35, %s36
      %p40 = pneg %p34
      %p41 = scmp.eq.s32.totalorder %s11, 1
      %p42 = por %p40, %p41
      %p43 = scmp.ne.s32.totalorder %s35, %s38
      %p44 = scmp.eq.s32.totalorder %s11, 0
      %p45 = por %p43, %p44
      %p46 = scmp.ne.s32.totalorder %s35, %s38
      %p47 = scmp.eq.s32.totalorder %s16, 1
      %p48 = por %p46, %p47
      %p49 = scmp.ne.s32.totalorder %s38, %s39
      %p50 = scmp.eq.s32.totalorder %s16, 0
      %p51 = por %p49, %p50
      %p52 = scmp.ne.s32.totalorder %s38, %s39
      %p53 = scmp.eq.s32.totalorder %s17, 1
      %p54 = por %p52, %p53
      %p56 = scmp.ne.s32.totalorder %s39, %s55
      %p57 = scmp.eq.s32.totalorder %s17, 0
      %p58 = por %p56, %p57
      %s59 = ssub.s32 %s18, %s30
      %s60 = ssub.s32 %s19, %s26
      %s61 = sor.u32 %s59, %s60
      %p62 = scmp.eq.s32.totalorder %s61, 0
      %s64 = sadd.s32 %s63, 1
      %s65 = scalar_select %p62, %s63, %s64
      %p68 = pneg %p62
      %p69 = scmp.eq.s32.totalorder %s11, 1
      %p70 = por %p68, %p69
      %p71 = scmp.ne.s32.totalorder %s63, %s66
      %p72 = scmp.eq.s32.totalorder %s11, 0
      %p73 = por %p71, %p72
      %p74 = scmp.ne.s32.totalorder %s63, %s66
      %p75 = scmp.eq.s32.totalorder %s16, 1
      %p76 = por %p74, %p75
      %p77 = scmp.ne.s32.totalorder %s66, %s67
      %p78 = scmp.eq.s32.totalorder %s16, 0
      %p79 = por %p77, %p78
      %p80 = scmp.ne.s32.totalorder %s66, %s67
      %p81 = scmp.eq.s32.totalorder %s17, 1
      %p82 = por %p80, %p81
      %p84 = scmp.ne.s32.totalorder %s67, %s83
      %p85 = scmp.eq.s32.totalorder %s17, 0
      %p86 = por %p84, %p85
      %s87 = ssub.s32 %s18, %s30
      %s88 = ssub.s32 %s19, %s26
      %s89 = sor.u32 %s87, %s88
      %p90 = scmp.eq.s32.totalorder %s89, 0
      %s92 = sadd.s32 %s91, 1
      %s93 = scalar_select %p90, %s91, %s92
      %p96 = pneg %p90
      %p97 = scmp.eq.s32.totalorder %s11, 1
      %p98 = por %p96, %p97
      %p99 = scmp.ne.s32.totalorder %s91, %s94
      %p100 = scmp.eq.s32.totalorder %s11, 0
      %p101 = por %p99, %p100
      %p102 = scmp.ne.s32.totalorder %s91, %s94
      %p103 = scmp.eq.s32.totalorder %s16, 1
      %p104 = por %p102, %p103
      %p105 = scmp.ne.s32.totalorder %s94, %s95
      %p106 = scmp.eq.s32.totalorder %s16, 0
      %p107 = por %p105, %p106
      %p108 = scmp.ne.s32.totalorder %s94, %s95
      %p109 = scmp.eq.s32.totalorder %s17, 1
      %p110 = por %p108, %p109
      %p112 = scmp.ne.s32.totalorder %s95, %s111
      %p113 = scmp.eq.s32.totalorder %s17, 0
      %p114 = por %p112, %p113
      %p115 = scmp.le.s32.totalorder 1, %s11
      %p116 = scmp.lt.s32.totalorder %s11, 3
      %p117 = pnand %p115, %p116
      %p118 = pneg %p117
      // Predicated region
      $region9: #{tpu_custom_call.1} parent=5 // pred_check
        _
      $region10: #{tpu_custom_call.1} parent=5 // pred_check_branch
        %120 = sbr.rel (%p117) target = $region12
      $region11: #{tpu_custom_call.1} parent=5 // pred_region
        %s121 = ssub.s32 %s11, 1
      $region12: #{tpu_custom_call.1} parent=5 // pred_fallthru
        _
      %p122 = scmp.lt.s32.totalorder %s11, 2
      // Predicated region
      $region13: #{tpu_custom_call.1} parent=5 // pred_check
        %p123 = pneg %p122
      $region14: #{tpu_custom_call.1} parent=5 // pred_check_branch
        %125 = sbr.rel (%p123) target = $region16
      $region15: #{tpu_custom_call.1} parent=5 // pred_region
        // Predicated region
        $region17: #{tpu_custom_call.1} parent=15 // pred_check
          %p126 = pneg %p45
        $region18: #{tpu_custom_call.1} parent=15 // pred_check_branch
          %128 = sbr.rel (%p126) target = $region20
        $region19: #{tpu_custom_call.1} parent=15 // pred_region
          %s129 = smul.u32 2, %s19
          %p130 = scmp.lt.s32.totalorder %s18, 1
          %s131 = scalar_select %p130, %s18, 1
          %p132 = scmp.lt.s32.totalorder %s129, 1
          %s133 = scalar_select %p132, %s129, 1
          %s134 = smul.addr %s131, 18
          %s135 = sadd.s32 %s133, %s134
          %s136 = smul.addr %s135, 8
          %s137 = scalar_lea.vmem %s0, %s136
          %s138 = smul.u32 2, %s19
        $region20: #{tpu_custom_call.1} parent=15 // pred_fallthru
          _
        // Predicated region
        $region21: #{tpu_custom_call.1} parent=15 // pred_check
          %p139 = pneg %p73
        $region22: #{tpu_custom_call.1} parent=15 // pred_check_branch
          %141 = sbr.rel (%p139) target = $region24
        $region23: #{tpu_custom_call.1} parent=15 // pred_region
          %s142 = smul.u32 2, %s19
          %p143 = scmp.lt.s32.totalorder %s18, 1
          %s144 = scalar_select %p143, %s18, 1
          %p145 = scmp.lt.s32.totalorder %s142, 1
          %s146 = scalar_select %p145, %s142, 1
          %s147 = smul.addr %s144, 2
          %s148 = sadd.s32 %s146, %s147
          %s149 = scalar_lea.vmem %s1, %s148
          %s150 = smul.u32 2, %s19
        $region24: #{tpu_custom_call.1} parent=15 // pred_fallthru
          _
      $region16: #{tpu_custom_call.1} parent=5 // pred_fallthru
        _
      %p151 = scmp.le.s32.totalorder 1, %s11
      %p152 = scmp.lt.s32.totalorder %s11, 3
      %p153 = pnand %p151, %p152
      %p154 = pneg %p153
      // Predicated region
      $region25: #{tpu_custom_call.1} parent=5 // pred_check
        _
      $region26: #{tpu_custom_call.1} parent=5 // pred_check_branch
        %156 = sbr.rel (%p153) target = $region28
      $region27: #{tpu_custom_call.1} parent=5 // pred_region
        %s157 = ssub.s32 %s11, 1
        %s158 = smul.u32 2, %s21
        %p159 = scmp.lt.s32.totalorder %s20, 1
        %s160 = scalar_select %p159, %s20, 1
        %p161 = scmp.lt.s32.totalorder %s158, 1
        %s162 = scalar_select %p161, %s158, 1
        %s163 = smul.addr %s160, 18
        %s164 = sadd.s32 %s162, %s163
        %s165 = smul.addr %s164, 8
        %s166 = scalar_lea.vmem %s0, %s165
        %p167 = pneg %p51
        %p168 = pneg %p48
        %s169 = smul.u32 2, %s21
        %p170 = scmp.lt.s32.totalorder %s20, 1
        %s171 = scalar_select %p170, %s20, 1
        %p172 = scmp.lt.s32.totalorder %s169, 1
        %s173 = scalar_select %p172, %s169, 1
        %s174 = smul.addr %s171, 2
        %s175 = sadd.s32 %s173, %s174
        %s176 = scalar_lea.vmem %s1, %s175
        %p177 = pneg %p79
        %p178 = pneg %p76
        %p179 = pneg %p107
        %p180 = pneg %p104
        %s181 = sand.u32 %s94, 1
        %s182 = scalar_lea.sflag [#allocation3], %s181
        %s183 = sand.u32 %s94, 1
        %s184 = smul.addr %s183, 8
        %s185 = scalar_lea.vmem [#allocation2], %s184
        %s186 = smul.u32 2, %s21
        %p187 = scmp.lt.s32.totalorder %s20, 1
        %s188 = scalar_select %p187, %s20, 1
        %p189 = scmp.lt.s32.totalorder %s186, 1
        %s190 = scalar_select %p189, %s186, 1
        %s191 = smul.addr %s188, 18
        %s192 = sadd.s32 %s190, %s191
        %s193 = smul.addr %s192, 8
        %s194 = scalar_lea.vmem %s0, %s193
        %s195 = smul.u32 2, %s21
        %s196 = smul.u32 2, %s21
        %p197 = scmp.lt.s32.totalorder %s20, 1
        %s198 = scalar_select %p197, %s20, 1
        %p199 = scmp.lt.s32.totalorder %s196, 1
        %s200 = scalar_select %p199, %s196, 1
        %s201 = smul.addr %s198, 2
        %s202 = sadd.s32 %s200, %s201
        %s203 = scalar_lea.vmem %s1, %s202
        %s204 = smul.u32 2, %s21
        %v205 = vld [vmem:[%s194] sm:$0xff]
        %v206 = vld [vmem:[%s194 + $0x8] sm:$0xff]
        %v207 = vld [vmem:[%s194 + $0x10] sm:$0xff]
        %v208 = vld [vmem:[%s194 + $0x18] sm:$0xff]
        %v209 = vld [vmem:[%s194 + $0x20] sm:$0xff]
        %v210 = vld [vmem:[%s194 + $0x28] sm:$0xff]
        %v211 = vld [vmem:[%s194 + $0x30] sm:$0xff]
        %v212 = vld [vmem:[%s194 + $0x38] sm:$0xff]
        %v213 = vld [vmem:[%s194 + $0x40] sm:$0xff]
        %v214 = vld [vmem:[%s194 + $0x48] sm:$0xff]
        %v215 = vld [vmem:[%s194 + $0x50] sm:$0xff]
        %v216 = vld [vmem:[%s194 + $0x58] sm:$0xff]
        %v217 = vld [vmem:[%s194 + $0x60] sm:$0xff]
        %v218 = vld [vmem:[%s194 + $0x68] sm:$0xff]
        %v219 = vld [vmem:[%s194 + $0x70] sm:$0xff]
        %v220 = vld [vmem:[%s194 + $0x78] sm:$0xff]
        %v221 = vld [vmem:[%s194 + $0x80] sm:$0x3]
        %v222 = vld [vmem:[%s194 + $0x88] sm:$0x3]
        %v223 = vld [vmem:[%s203] sm:$0x3]
        %v224 = vmax.f32 %v205, %v209
        %v225 = vmax.f32 %v207, %v211
        %v226 = vmax.f32 %v224, %v213
        %v227 = vmax.f32 %v225, %v215
        %v228 = vmax.f32 %v226, %v217
        %v229 = vmax.f32 %v227, %v219
        %vm230 = vcmask 1041408
        %v231 = vsel %vm230, %v221, -inf
        %v232 = vmax.f32 %v228, %v231
        %v233 = vmax.f32 %v232, %v229
        %v234 = vrot.slane %v233, 4
        %v235 = vmax.f32 %v233, %v234
        %v236 = vrot.slane %v235, 2
        %v237 = vmax.f32 %v235, %v236
        %v238 = vrot.slane %v237, 1
        %v239 = vmax.f32 %v237, %v238
        %v240 = vmax.f32 %v206, %v210
        %v241 = vmax.f32 %v208, %v212
        %v242 = vmax.f32 %v240, %v214
        %v243 = vmax.f32 %v241, %v216
        %v244 = vmax.f32 %v242, %v218
        %v245 = vmax.f32 %v243, %v220
        %v246 = vsel %vm230, %v222, -inf
        %v247 = vmax.f32 %v244, %v246
        %v248 = vmax.f32 %v247, %v245
        %v249 = vrot.slane %v248, 4
        %v250 = vmax.f32 %v248, %v249
        %v251 = vrot.slane %v250, 2
        %v252 = vmax.f32 %v250, %v251
        %v253 = vrot.slane %v252, 1
        %v254 = vmax.f32 %v252, %v253
        %v255 = vsub.f32 %v205, %v239
        %v256 = vsub.f32 %v206, %v254
        %v257 = vsub.f32 %v207, %v239
        %v258 = vsub.f32 %v208, %v254
        %v259 = vsub.f32 %v209, %v239
        %v260 = vsub.f32 %v210, %v254
        %v261 = vsub.f32 %v211, %v239
        %v262 = vsub.f32 %v212, %v254
        %v263 = vsub.f32 %v213, %v239
        %v264 = vsub.f32 %v214, %v254
        %v265 = vsub.f32 %v215, %v239
        %v266 = vsub.f32 %v216, %v254
        %v267 = vsub.f32 %v217, %v239
        %v268 = vsub.f32 %v218, %v254
        %v269 = vsub.f32 %v219, %v239
        %v270 = vsub.f32 %v220, %v254
        %v271 = vsub.f32 %v221, %v239
        %v272 = vsub.f32 %v222, %v254
        %v273 = vmul.f32 %v255, 1.442695
        %v274 = vpow.pop %v273
        %v275 = vmul.f32 %v256, 1.442695
        %v276 = vpow.pop %v275
        %v277 = vmul.f32 %v257, 1.442695
        %v278 = vpow.pop %v277
        %v279 = vmul.f32 %v258, 1.442695
        %v280 = vpow.pop %v279
        %v281 = vmul.f32 %v259, 1.442695
        %v282 = vpow.pop %v281
        %v283 = vmul.f32 %v260, 1.442695
        %v284 = vpow.pop %v283
        %v285 = vmul.f32 %v261, 1.442695
        %v286 = vpow.pop %v285
        %v287 = vmul.f32 %v262, 1.442695
        %v288 = vpow.pop %v287
        %v289 = vmul.f32 %v263, 1.442695
        %v290 = vpow.pop %v289
        %v291 = vmul.f32 %v264, 1.442695
        %v292 = vpow.pop %v291
        %v293 = vmul.f32 %v265, 1.442695
        %v294 = vpow.pop %v293
        %v295 = vmul.f32 %v266, 1.442695
        %v296 = vpow.pop %v295
        %v297 = vmul.f32 %v267, 1.442695
        %v298 = vpow.pop %v297
        %v299 = vmul.f32 %v268, 1.442695
        %v300 = vpow.pop %v299
        %v301 = vmul.f32 %v269, 1.442695
        %v302 = vpow.pop %v301
        %v303 = vmul.f32 %v270, 1.442695
        %v304 = vpow.pop %v303
        %v305 = vmul.f32 %v271, 1.442695
        %v306 = vpow.pop %v305
        %v307 = vmul.f32 %v272, 1.442695
        %v308 = vpow.pop %v307
        %v309 = vadd.f32 %v274, %v278
        %v310 = vadd.f32 %v309, %v282
        %v311 = vadd.f32 %v310, %v286
        %v312 = vadd.f32 %v311, %v290
        %v313 = vadd.f32 %v312, %v294
        %v314 = vadd.f32 %v313, %v298
        %v315 = vadd.f32 %v314, %v302
        %v316 = vsel %vm230, %v306, 0.0
        %v317 = vadd.f32 %v315, %v316
        %v318 = vrot.slane %v317, 4
        %v319 = vadd.f32 %v317, %v318
        %v320 = vrot.slane %v319, 2
        %v321 = vadd.f32 %v319, %v320
        %v322 = vrot.slane %v321, 1
        %v323 = vadd.f32 %v321, %v322
        %v324 = vadd.f32 %v276, %v280
        %v325 = vadd.f32 %v324, %v284
        %v326 = vadd.f32 %v325, %v288
        %v327 = vadd.f32 %v326, %v292
        %v328 = vadd.f32 %v327, %v296
        %v329 = vadd.f32 %v328, %v300
        %v330 = vadd.f32 %v329, %v304
        %v331 = vsel %vm230, %v308, 0.0
        %v332 = vadd.f32 %v330, %v331
        %v333 = vrot.slane %v332, 4
        %v334 = vadd.f32 %v332, %v333
        %v335 = vrot.slane %v334, 2
        %v336 = vadd.f32 %v334, %v335
        %v337 = vrot.slane %v336, 1
        %v338 = vadd.f32 %v336, %v337
        %v339 = vlog2.pop %v323
        %v340 = vmul.f32 %v339, 0.6931472
        %v341 = vlog2.pop %v338
        %v342 = vmul.f32 %v341, 0.6931472
        %v343 = vadd.f32 %v239, %v340
        %v344 = vadd.f32 %v254, %v342
        %v345 = vlaneseq
        %v346 = vshrl.u32 %v345, 7
        %v347 = vadd.s32 %v346, 8
        %v348 = vadd.s32 %v346, 16
        %v349 = vadd.s32 %v346, 24
        %v350 = vadd.s32 %v346, 32
        %v351 = vadd.s32 %v346, 40
        %v352 = vadd.s32 %v346, 48
        %v353 = vadd.s32 %v346, 56
        %v354 = vadd.s32 %v346, 64
        %v355 = vlaneseq
        %v356 = vshrl.u32 %v355, 7
        %v357 = vsub.s32 0, %v356
        %v358 = vrot.slane %v223, %v357
        %v359 = vlaneseq
        %v360 = vshrl.u32 %v359, 7
        %v361 = vsub.s32 1, %v360
        %v362 = vrot.slane %v223, %v361
        %vm363 = vcmp.eq.s32.totalorder %v346, %v358
        %vm364 = vcmp.eq.s32.totalorder %v346, %v362
        %vm365 = vcmp.eq.s32.totalorder %v347, %v358
        %vm366 = vcmp.eq.s32.totalorder %v347, %v362
        %vm367 = vcmp.eq.s32.totalorder %v348, %v358
        %vm368 = vcmp.eq.s32.totalorder %v348, %v362
        %vm369 = vcmp.eq.s32.totalorder %v349, %v358
        %vm370 = vcmp.eq.s32.totalorder %v349, %v362
        %vm371 = vcmp.eq.s32.totalorder %v350, %v358
        %vm372 = vcmp.eq.s32.totalorder %v350, %v362
        %vm373 = vcmp.eq.s32.totalorder %v351, %v358
        %vm374 = vcmp.eq.s32.totalorder %v351, %v362
        %vm375 = vcmp.eq.s32.totalorder %v352, %v358
        %vm376 = vcmp.eq.s32.totalorder %v352, %v362
        %vm377 = vcmp.eq.s32.totalorder %v353, %v358
        %vm378 = vcmp.eq.s32.totalorder %v353, %v362
        %vm379 = vcmp.eq.s32.totalorder %v354, %v358
        %vm380 = vcmp.eq.s32.totalorder %v354, %v362
        %v381 = vsel %vm363, %v205, 0.0
        %v382 = vsel %vm364, %v206, 0.0
        %v383 = vsel %vm365, %v207, 0.0
        %v384 = vsel %vm366, %v208, 0.0
        %v385 = vsel %vm367, %v209, 0.0
        %v386 = vsel %vm368, %v210, 0.0
        %v387 = vsel %vm369, %v211, 0.0
        %v388 = vsel %vm370, %v212, 0.0
        %v389 = vsel %vm371, %v213, 0.0
        %v390 = vsel %vm372, %v214, 0.0
        %v391 = vsel %vm373, %v215, 0.0
        %v392 = vsel %vm374, %v216, 0.0
        %v393 = vsel %vm375, %v217, 0.0
        %v394 = vsel %vm376, %v218, 0.0
        %v395 = vsel %vm377, %v219, 0.0
        %v396 = vsel %vm378, %v220, 0.0
        %v397 = vsel %vm379, %v221, 0.0
        %v398 = vsel %vm380, %v222, 0.0
        %vm399 = vcmask 1040384
        %v400 = vsel %vm399, %v343, 0.0
        %v401 = vsel %vm399, %v344, 0.0
        %v402 = vadd.f32 %v400, %v401
        %403 = vadd.xlane.f32.xlu0 %v402
        %v404 = vpop.xlane.xlu0 %403
        %v405 = vrot.slane %v404, 4
        %v406 = vadd.f32 %v404, %v405
        %v407 = vrot.slane %v406, 2
        %v408 = vadd.f32 %v406, %v407
        %v409 = vrot.slane %v408, 1
        %v410 = vadd.f32 %v408, %v409
        %s411 = vtos %v410
        %v412 = vadd.f32 %v381, %v382
        %v413 = vadd.f32 %v412, %v383
        %v414 = vadd.f32 %v413, %v384
        %v415 = vadd.f32 %v414, %v385
        %v416 = vadd.f32 %v415, %v386
        %v417 = vadd.f32 %v416, %v387
        %v418 = vadd.f32 %v417, %v388
        %v419 = vadd.f32 %v418, %v389
        %v420 = vadd.f32 %v419, %v390
        %v421 = vadd.f32 %v420, %v391
        %v422 = vadd.f32 %v421, %v392
        %v423 = vadd.f32 %v422, %v393
        %v424 = vadd.f32 %v423, %v394
        %v425 = vadd.f32 %v424, %v395
        %v426 = vadd.f32 %v425, %v396
        %v427 = vsel %vm230, %v397, 0.0
        %v428 = vadd.f32 %v426, %v427
        %v429 = vsel %vm230, %v398, 0.0
        %v430 = vadd.f32 %v428, %v429
        %431 = vadd.xlane.f32.xlu0 %v430
        %v432 = vpop.xlane.xlu0 %431
        %v433 = vrot.slane %v432, 4
        %v434 = vadd.f32 %v432, %v433
        %v435 = vrot.slane %v434, 2
        %v436 = vadd.f32 %v434, %v435
        %v437 = vrot.slane %v436, 1
        %v438 = vadd.f32 %v436, %v437
        %s439 = vtos %v438
        %s440 = ssub.f32 %s411, %s439
        %v441 = vstv %s440
        %442 = vst [vmem:[%s185] sm:$0xff] %v441
        %s443 = sand.u32 %s94, 1
        %s444 = scalar_lea.sflag [#allocation3], %s443
        %s445 = sand.u32 %s94, 1
        %s446 = smul.addr %s445, 8
        %s447 = scalar_lea.vmem [#allocation2], %s446
        // Predicated region
        $region29: #{tpu_custom_call.1} parent=27 // pred_check
          %p448 = pneg %p104
        $region30: #{tpu_custom_call.1} parent=27 // pred_check_branch
          %450 = sbr.rel (%p448) target = $region32
        $region31: #{tpu_custom_call.1} parent=27 // pred_region
          %s452 = ssub.s32 128, 128
          %453 = vsyncadd %s444, %s452
          %s454 = sadd.s32 %s21, %s20
          %s455 = smul.addr %s454, 128
          %s456 = scalar_lea.hbm %s2, %s455
          %s458 = sshll.u32 %s447, 4
          %s459 = int_to_ptr.vmem [resolvable:$true] %s458
          %461 = dma.vmem_to_hbm [thread:$0]  %s459, 128, %s456, %s444
        $region32: #{tpu_custom_call.1} parent=27 // pred_fallthru
          _
      $region28: #{tpu_custom_call.1} parent=5 // pred_fallthru
        _
      %p462 = scmp.le.s32.totalorder 2, %s11
      // Predicated region
      $region33: #{tpu_custom_call.1} parent=5 // pred_check
        %p463 = pneg %p462
      $region34: #{tpu_custom_call.1} parent=5 // pred_check_branch
        %465 = sbr.rel (%p463) target = $region36
      $region35: #{tpu_custom_call.1} parent=5 // pred_region
        %s466 = ssub.s32 %s11, 2
        // Predicated region
        $region37: #{tpu_custom_call.1} parent=35 // pred_check
          %p467 = pneg %p110
        $region38: #{tpu_custom_call.1} parent=35 // pred_check_branch
          %469 = sbr.rel (%p467) target = $region40
        $region39: #{tpu_custom_call.1} parent=35 // pred_region
          %s470 = sand.u32 %s95, 1
          %s471 = scalar_lea.sflag [#allocation3], %s470
          %s472 = sand.u32 %s95, 1
          %s473 = smul.addr %s472, 8
          %s474 = scalar_lea.vmem [#allocation2], %s473
          %475 = dma.done %s471, 128
        $region40: #{tpu_custom_call.1} parent=35 // pred_fallthru
          _
      $region36: #{tpu_custom_call.1} parent=5 // pred_fallthru
        _
    $region6: #{tpu_custom_call.1} parent=1 // loop_footer
      %s15 = sadd.s32 1, %s11
    $region7: #{tpu_custom_call.1} parent=1 // loop_footer_branch
      %10 = sbr.rel target = $region3
    $region8: #{tpu_custom_call.1} parent=1 // loop_exit
      _
    %476 = vsyncpa [#allocation3], 1
    %s477 = scalar_lea.sflag [#allocation3], 1
    %478 = vsyncpa %s477, 1

</llo_original>
